<compile_context>
chip_gen: v6e
topology: v6e:2x2x1
jax: 0.10.0
libtpu: 0.0.40
codegen_flags: <defaults>
</compile_context>

<pallas_src>
import functools

import jax
import jax.numpy as jnp
from jax.experimental import pallas as pl
from jax.experimental.pallas import tpu as pltpu

KPAD = 128  # lane-dense width for top-k outputs / carries


# ---------------------------------------------------------------------------
# Kernels
# ---------------------------------------------------------------------------
def _topk_encode_kernel(x_ref, pre_bias_ref, w_enc_ref, bias_or_mask_ref,
                        idxs_ref, vals_ref, run_vals, run_idxs, *, k, mode):
    """Per-(B-tile, F-tile) encoder step with streaming top-k merge.

    mode == "bias": scores = (x - pre_bias) @ W_enc + latent_bias   (main top-k)
    mode == "mask": scores = (x - pre_bias) @ W_enc * dead_mask     (auxk top-k)
    The running (k best values, global indices) are carried across F-tiles in a
    lane-dense (tb, KPAD) VMEM scratch; outputs are written at the last F-tile.
    """
    f = pl.program_id(1)
    nf = pl.num_programs(1)
    tb = x_ref.shape[0]
    tf = w_enc_ref.shape[1]

    @pl.when(f == 0)
    def _init():
        run_vals[...] = jnp.full((tb, KPAD), -jnp.inf, jnp.float32)
        run_idxs[...] = jnp.full((tb, KPAD), -1, jnp.int32)

    # Encoder matmul for this tile (bf16 MXU inputs, f32 accumulation).
    diff = x_ref[...] - pre_bias_ref[...]                       # f32 [tb, D]
    latents = jnp.dot(diff.astype(jnp.bfloat16), w_enc_ref[...],
                      preferred_element_type=jnp.float32)       # f32 [tb, tf]
    if mode == "bias":
        scores = latents + bias_or_mask_ref[...]
    else:
        scores = latents * bias_or_mask_ref[...]

    # Candidate pool = running top-k (global idxs) + this tile (global idxs).
    tile_base = f * tf
    tile_iota = jax.lax.broadcasted_iota(jnp.int32, (tb, tf), 1) + tile_base
    pool_vals = jnp.concatenate([run_vals[...], scores], axis=1)
    pool_idxs = jnp.concatenate([run_idxs[...], tile_iota], axis=1)

    col = jax.lax.broadcasted_iota(jnp.int32, (tb, KPAD), 1)
    new_vals = jnp.full((tb, KPAD), -jnp.inf, jnp.float32)
    new_idxs = jnp.full((tb, KPAD), -1, jnp.int32)
    work = pool_vals
    for j in range(k):  # k is small & static
        m = jnp.max(work, axis=-1, keepdims=True)                              # [tb, 1]
        sel = jnp.min(jnp.where(work == m, pool_idxs, 2 ** 30),
                      axis=-1, keepdims=True)                                  # min global idx
        new_vals = jnp.where(col == j, m, new_vals)
        new_idxs = jnp.where(col == j, sel, new_idxs)
        work = jnp.where(pool_idxs == sel, -jnp.inf, work)

    run_vals[...] = new_vals
    run_idxs[...] = new_idxs

    @pl.when(f == nf - 1)
    def _finalize():
        idxs_ref[...] = jnp.maximum(new_idxs, 0)        # padding lanes -> 0 (sliced off)
        vals_ref[...] = jnp.maximum(new_vals, 0.0)      # relu(topk(...))


def _sparse_decode_kernel(idx_ref, val_ref, w_dec_ref, pre_bias_ref,
                          out_ref, acc_ref, *, k):
    """Per-(B-tile, F-tile) sparse @ dense: build only a [tb, tf] slab, accumulate."""
    f = pl.program_id(1)
    nf = pl.num_programs(1)
    tb = idx_ref.shape[0]
    tf = w_dec_ref.shape[0]

    @pl.when(f == 0)
    def _init():
        acc_ref[...] = jnp.zeros_like(acc_ref)

    tile_base = f * tf
    iota_local = jax.lax.broadcasted_iota(jnp.int32, (tb, tf), 1)
    dense = jnp.zeros((tb, tf), jnp.float32)
    for j in range(k):  # static, small
        idx_j = idx_ref[:, j:j + 1] - tile_base         # [tb, 1], out-of-tile never matches
        val_j = val_ref[:, j:j + 1]
        dense = dense + jnp.where(iota_local == idx_j, val_j, 0.0)

    acc_ref[...] += jnp.dot(dense.astype(jnp.bfloat16), w_dec_ref[...],
                            preferred_element_type=jnp.float32)

    @pl.when(f == nf - 1)
    def _finalize():
        out_ref[...] = (acc_ref[...] + pre_bias_ref[...]).astype(out_ref.dtype)


# ---------------------------------------------------------------------------
# Tiling helpers (generation-aware VMEM budget)
# ---------------------------------------------------------------------------
def _vmem_capacity_bytes():
    try:
        return int(pltpu.get_tpu_info().vmem_capacity_bytes)
    except Exception:
        return 64 * 1024 * 1024   # v7x-safe fallback


def _pick_b_tile(batch):
    for cand in (256, 128, 64, 32, 16, 8):
        if cand <= batch and batch % cand == 0:
            return cand
    return batch


def _pick_f_tile(d_model, n_features, tb, vmem_bytes):
    budget = vmem_bytes // 4   # headroom for double-buffering + Mosaic scratch
    best = None
    for cand in (2048, 1024, 512, 256, 128):
        if cand <= n_features and n_features % cand == 0:
            need = 2 * (d_model * cand * 2) + 3 * (tb * cand * 4)
            best = cand
            if need <= budget:
                break
    return best if best is not None else n_features


# ---------------------------------------------------------------------------
# Module wrapper
# ---------------------------------------------------------------------------
class TmsFastAutoencoder:
    """TopK sparse autoencoder (forward pass) with Pallas TPU kernels."""

    def __init__(self, n_features, d_model, k, dead_steps_threshold, auxk=None, seed=1234):
        assert k <= KPAD and (auxk is None or auxk <= KPAD)
        self.n_features = n_features
        self.d_model = d_model
        self.k = k
        self.auxk = auxk
        self.dead_steps_threshold = dead_steps_threshold

        wkey = jax.random.PRNGKey(seed)
        # xavier_normal_: std = sqrt(2 / (fan_in + fan_out))
        std = (2.0 / (d_model + n_features)) ** 0.5
        self.W_enc = jax.random.normal(wkey, (d_model, n_features), jnp.float32) * std
        w_dec = self.W_enc.T
        norms = jnp.linalg.norm(w_dec, axis=1, keepdims=True)
        self.W_dec = w_dec / norms                       # unit_norm_decoder_
        # bf16 copies fed to the MXU kernels (halves HBM weight traffic).
        self.W_enc_bf16 = self.W_enc.astype(jnp.bfloat16)
        self.W_dec_bf16 = self.W_dec.astype(jnp.bfloat16)

        self.pre_bias = jnp.zeros((d_model,), jnp.float32)
        self.latent_bias = jnp.zeros((n_features,), jnp.float32)
        self.stats_last_nonzero = jnp.zeros((n_features,), jnp.int32)

        self._vmem_bytes = _vmem_capacity_bytes()
        self._vmem_limit = min(self._vmem_bytes // 2, 96 * 1024 * 1024)

    # -- shared pallas_call builder for the two top-k passes ------------------
    def _topk_pass(self, x, bias_or_mask_row, k, mode):
        B = x.shape[0]
        D, F = self.d_model, self.n_features
        tb = _pick_b_tile(B)
        tf = _pick_f_tile(D, F, tb, self._vmem_bytes)
        grid = (B // tb, F // tf)

        bytes_accessed = (B * D * 4 + D * 4 + D * F * 2 + F * 4 + 2 * B * KPAD * 4)
        idxs_pad, vals_pad = pl.pallas_call(
            functools.partial(_topk_encode_kernel, k=k, mode=mode),
            out_shape=(
                jax.ShapeDtypeStruct((B, KPAD), jnp.int32),
                jax.ShapeDtypeStruct((B, KPAD), jnp.float32),
            ),
            grid_spec=pltpu.PrefetchScalarGridSpec(
                num_scalar_prefetch=0,
                grid=grid,
                in_specs=[
                    pl.BlockSpec((tb, D), lambda i, f: (i, 0)),   # x
                    pl.BlockSpec((1, D), lambda i, f: (0, 0)),    # pre_bias
                    pl.BlockSpec((D, tf), lambda i, f: (0, f)),   # W_enc (bf16)
                    pl.BlockSpec((1, tf), lambda i, f: (0, f)),   # latent_bias / dead_mask
                ],
                out_specs=(
                    pl.BlockSpec((tb, KPAD), lambda i, f: (i, 0)),
                    pl.BlockSpec((tb, KPAD), lambda i, f: (i, 0)),
                ),
                scratch_shapes=[
                    pltpu.VMEM((tb, KPAD), jnp.float32),   # running top-k vals
                    pltpu.VMEM((tb, KPAD), jnp.int32),     # running top-k idxs
                ],
            ),
            compiler_params=pltpu.CompilerParams(
                dimension_semantics=("parallel", "arbitrary"),
                vmem_limit_bytes=self._vmem_limit,
            ),
            cost_estimate=pl.CostEstimate(
                flops=2 * B * D * F, transcendentals=0, bytes_accessed=bytes_accessed),
        )(x, self.pre_bias.reshape(1, D), self.W_enc_bf16, bias_or_mask_row)
        return idxs_pad[:, :k], vals_pad[:, :k]

    def encode(self, x):
        F = self.n_features
        topk_idxs, topk_vals = self._topk_pass(
            x, self.latent_bias.reshape(1, F), self.k, mode="bias")

        # stats bookkeeping (scatter-add over F) — tiny glue, stays in plain JAX.
        hits = (topk_vals > 0.001).astype(jnp.int32).reshape(-1)
        num_nonzero = jnp.zeros((F,), jnp.int32).at[topk_idxs.reshape(-1)].add(hits)
        stats = self.stats_last_nonzero * (1 - jnp.minimum(num_nonzero, 1)) + 1
        self.stats_last_nonzero = stats

        auxk_idxs, auxk_vals = None, None
        if self.auxk is not None:
            dead_mask = (stats > self.dead_steps_threshold).astype(jnp.float32).reshape(1, F)
            # Recompute the encoder tile in-kernel instead of round-tripping [B,F]
            # latents through HBM (stats update between passes keeps exact semantics).
            auxk_idxs, auxk_vals = self._topk_pass(x, dead_mask, self.auxk, mode="mask")

        return topk_idxs, topk_vals, auxk_idxs, auxk_vals

    def decode(self, topk_idxs, topk_vals):
        B = topk_idxs.shape[0]
        D, F, k = self.d_model, self.n_features, self.k
        tb = _pick_b_tile(B)
        tf = _pick_f_tile(D, F, tb, self._vmem_bytes)
        grid = (B // tb, F // tf)

        bytes_accessed = B * k * 8 + F * D * 2 + D * 4 + B * D * 4
        # TODO(synk): a scalar-prefetch W_dec row-gather decode (only k rows/sample from
        # HBM) would remove the remaining F/k FLOP overhead of the per-tile dense slab.
        return pl.pallas_call(
            functools.partial(_sparse_decode_kernel, k=k),
            out_shape=jax.ShapeDtypeStruct((B, D), jnp.float32),
            grid_spec=pltpu.PrefetchScalarGridSpec(
                num_scalar_prefetch=0,
                grid=grid,
                in_specs=[
                    pl.BlockSpec((tb, k), lambda i, f: (i, 0)),   # topk_idxs
                    pl.BlockSpec((tb, k), lambda i, f: (i, 0)),   # topk_vals
                    pl.BlockSpec((tf, D), lambda i, f: (f, 0)),   # W_dec (bf16)
                    pl.BlockSpec((1, D), lambda i, f: (0, 0)),    # pre_bias
                ],
                out_specs=pl.BlockSpec((tb, D), lambda i, f: (i, 0)),
                scratch_shapes=[pltpu.VMEM((tb, D), jnp.float32)],
            ),
            compiler_params=pltpu.CompilerParams(
                dimension_semantics=("parallel", "arbitrary"),
                vmem_limit_bytes=self._vmem_limit,
            ),
            cost_estimate=pl.CostEstimate(
                flops=2 * B * F * D, transcendentals=0, bytes_accessed=bytes_accessed),
        )(topk_idxs, topk_vals, self.W_dec_bf16, self.pre_bias.reshape(1, D))

    def forward(self, x):
        topk_idxs, topk_vals, auxk_idxs, auxk_vals = self.encode(x)
        recons = self.decode(topk_idxs, topk_vals)
        return recons, dict(auxk_idxs=auxk_idxs, auxk_vals=auxk_vals)


if __name__ == "__main__":
    # Small shapes consistent with the module: B=8 activations of d_model=32,
    # n_features=64 latents, k=4, auxk=8.
    B, D, F, k, auxk = 8, 32, 64, 4, 8
    model = TmsFastAutoencoder(n_features=F, d_model=D, k=k,
                               dead_steps_threshold=0, auxk=auxk)

    key = jax.random.PRNGKey(0)
    x = jax.random.normal(key, (B, D), jnp.float32)

    recons, aux = model.forward(x)
    jax.block_until_ready(recons)
    if aux["auxk_idxs"] is not None:
        jax.block_until_ready(aux["auxk_idxs"])
        jax.block_until_ready(aux["auxk_vals"])

    assert recons.shape == (B, D)
    assert bool(jnp.all(jnp.isfinite(recons)))
    assert aux["auxk_idxs"].shape == (B, auxk)
    assert aux["auxk_vals"].shape == (B, auxk)
    assert bool(jnp.all((aux["auxk_idxs"] >= 0) & (aux["auxk_idxs"] < F)))
    print("KERNEL_OK")
</pallas_src>

<mosaic_0001>
module attributes {stable_mosaic.version = 11 : i64} {
  func.func @_topk_encode_kernel(%arg0: i32, %arg1: i32, %arg2: memref<8x32xf32, #tpu.memory_space<vmem>>, %arg3: memref<1x32xf32, #tpu.memory_space<vmem>>, %arg4: memref<32x64xbf16, #tpu.memory_space<vmem>>, %arg5: memref<1x64xf32, #tpu.memory_space<vmem>>, %arg6: memref<8x128xi32, #tpu.memory_space<vmem>>, %arg7: memref<8x128xf32, #tpu.memory_space<vmem>>, %arg8: memref<8x128xf32, #tpu.memory_space<vmem>>, %arg9: memref<8x128xi32, #tpu.memory_space<vmem>>) attributes {dimension_semantics = [#tpu.dimension_semantics<parallel>, #tpu.dimension_semantics<arbitrary>], iteration_bounds = array<i64: 1, 1>, scalar_prefetch = 0 : i64, scratch_operands = 2 : i64, tpu.core_type = #tpu.core_type<tc>, window_params = [{transform_indices = @transform_0, window_bounds = array<i64: 8, 32>}, {pipeline_mode = #tpu.pipeline_mode<synchronous>, transform_indices = @transform_1, window_bounds = array<i64: 1, 32>}, {transform_indices = @transform_2, window_bounds = array<i64: 32, 64>}, {transform_indices = @transform_3, window_bounds = array<i64: 1, 64>}, {transform_indices = @transform_4, window_bounds = array<i64: 8, 128>}, {transform_indices = @transform_5, window_bounds = array<i64: 8, 128>}]} {
    %c0_i32 = arith.constant 0 : i32
    %0 = arith.cmpi eq, %arg1, %c0_i32 : i32
    %1 = arith.extui %0 : i1 to i32
    %c0_i32_0 = arith.constant 0 : i32
    %2 = arith.cmpi ne, %1, %c0_i32_0 : i32
    scf.if %2 {
      %cst_38 = arith.constant 0xFF800000 : f32
      %113 = vector.broadcast %cst_38 : f32 to vector<8x128xf32>
      %c0_39 = arith.constant 0 : index
      %c0_40 = arith.constant 0 : index
      %114 = vector.load %arg8[%c0_39, %c0_40] : memref<8x128xf32, #tpu.memory_space<vmem>>, vector<8x128xf32>
      tpu.vector_store %arg8[%c0_39, %c0_40], %113 {strides = array<i32>} : memref<8x128xf32, #tpu.memory_space<vmem>>, vector<8x128xf32>,
      %c-1_i32_41 = arith.constant -1 : i32
      %115 = vector.broadcast %c-1_i32_41 : i32 to vector<8x128xi32>
      %c0_42 = arith.constant 0 : index
      %c0_43 = arith.constant 0 : index
      %116 = vector.load %arg9[%c0_42, %c0_43] : memref<8x128xi32, #tpu.memory_space<vmem>>, vector<8x128xi32>
      tpu.vector_store %arg9[%c0_42, %c0_43], %115 {strides = array<i32>} : memref<8x128xi32, #tpu.memory_space<vmem>>, vector<8x128xi32>,
    } else {
    }
    %c0 = arith.constant 0 : index
    %c0_1 = arith.constant 0 : index
    %3 = vector.load %arg2[%c0, %c0_1] : memref<8x32xf32, #tpu.memory_space<vmem>>, vector<8x32xf32>
    %c0_2 = arith.constant 0 : index
    %c0_3 = arith.constant 0 : index
    %4 = vector.load %arg3[%c0_2, %c0_3] : memref<1x32xf32, #tpu.memory_space<vmem>>, vector<1x32xf32>
    %5 = vector.broadcast %4 : vector<1x32xf32> to vector<8x32xf32>
    %6 = arith.subf %3, %5 : vector<8x32xf32>
    %7 = arith.truncf %6 : vector<8x32xf32> to vector<8x32xbf16>
    %c0_4 = arith.constant 0 : index
    %c0_5 = arith.constant 0 : index
    %8 = vector.load %arg4[%c0_4, %c0_5] : memref<32x64xbf16, #tpu.memory_space<vmem>>, vector<32x64xbf16>
    %cst = arith.constant dense<0.000000e+00> : vector<8x64xf32>
    %9 = tpu.matmul %7, %8, %cst {dimension_numbers = #tpu.dot_dimension_numbers<[1], [0], [0], [1], [0, 0, 1, 1], [], []>} : vector<8x32xbf16>, vector<32x64xbf16>, vector<8x64xf32> -> vector<8x64xf32>
    %c0_6 = arith.constant 0 : index
    %c0_7 = arith.constant 0 : index
    %10 = vector.load %arg5[%c0_6, %c0_7] : memref<1x64xf32, #tpu.memory_space<vmem>>, vector<1x64xf32>
    %11 = vector.broadcast %10 : vector<1x64xf32> to vector<8x64xf32>
    %12 = arith.addf %9, %11 : vector<8x64xf32>
    %c64_i32 = arith.constant 64 : i32
    %13 = arith.muli %arg1, %c64_i32 : i32
    %14 = tpu.iota {dimensions = array<i32: 1>} : vector<8x64xi32>
    %15 = vector.broadcast %13 : i32 to vector<8x64xi32>
    %16 = arith.addi %14, %15 : vector<8x64xi32>
    %c0_8 = arith.constant 0 : index
    %c0_9 = arith.constant 0 : index
    %17 = vector.load %arg8[%c0_8, %c0_9] : memref<8x128xf32, #tpu.memory_space<vmem>>, vector<8x128xf32>
    %18 = tpu.concatenate %17, %12 in 1 : vector<8x128xf32>, vector<8x64xf32> -> vector<8x192xf32>
    %c0_10 = arith.constant 0 : index
    %c0_11 = arith.constant 0 : index
    %19 = vector.load %arg9[%c0_10, %c0_11] : memref<8x128xi32, #tpu.memory_space<vmem>>, vector<8x128xi32>
    %20 = tpu.concatenate %19, %16 in 1 : vector<8x128xi32>, vector<8x64xi32> -> vector<8x192xi32>
    %21 = tpu.iota {dimensions = array<i32: 1>} : vector<8x128xi32>
    %cst_12 = arith.constant 0xFF800000 : f32
    %22 = vector.broadcast %cst_12 : f32 to vector<8x128xf32>
    %c-1_i32 = arith.constant -1 : i32
    %23 = vector.broadcast %c-1_i32 : i32 to vector<8x128xi32>
    %cst_13 = arith.constant dense<0xFF800000> : vector<8xf32>
    %24 = vector.multi_reduction <maximumf>, %18, %cst_13 [1] : vector<8x192xf32> to vector<8xf32>
    %25 = vector.shape_cast %24 : vector<8xf32> to vector<8x1xf32>
    %26 = vector.broadcast %25 : vector<8x1xf32> to vector<8x192xf32>
    %27 = arith.cmpf oeq, %18, %26 : vector<8x192xf32>
    %c1073741824_i32 = arith.constant 1073741824 : i32
    %28 = vector.broadcast %c1073741824_i32 : i32 to vector<8x192xi32>
    %29 = arith.select %27, %20, %28 : vector<8x192xi1>, vector<8x192xi32>
    %cst_14 = arith.constant dense<2147483647> : vector<8xi32>
    %30 = vector.multi_reduction <minsi>, %29, %cst_14 [1] : vector<8x192xi32> to vector<8xi32>
    %31 = vector.shape_cast %30 : vector<8xi32> to vector<8x1xi32>
    %c0_i32_15 = arith.constant 0 : i32
    %32 = vector.broadcast %c0_i32_15 : i32 to vector<8x128xi32>
    %33 = arith.cmpi eq, %21, %32 : vector<8x128xi32>
    %34 = vector.shape_cast %25 : vector<8x1xf32> to vector<8x1xf32>
    %35 = vector.broadcast %34 : vector<8x1xf32> to vector<8x128xf32>
    %36 = arith.select %33, %35, %22 : vector<8x128xi1>, vector<8x128xf32>
    %c0_i32_16 = arith.constant 0 : i32
    %37 = vector.broadcast %c0_i32_16 : i32 to vector<8x128xi32>
    %38 = arith.cmpi eq, %21, %37 : vector<8x128xi32>
    %39 = vector.shape_cast %31 : vector<8x1xi32> to vector<8x1xi32>
    %40 = vector.broadcast %39 : vector<8x1xi32> to vector<8x128xi32>
    %41 = arith.select %38, %40, %23 : vector<8x128xi1>, vector<8x128xi32>
    %42 = vector.broadcast %31 : vector<8x1xi32> to vector<8x192xi32>
    %43 = arith.cmpi eq, %20, %42 : vector<8x192xi32>
    %cst_17 = arith.constant 0xFF800000 : f32
    %44 = vector.broadcast %cst_17 : f32 to vector<8x192xf32>
    %45 = arith.select %43, %44, %18 : vector<8x192xi1>, vector<8x192xf32>
    %cst_18 = arith.constant dense<0xFF800000> : vector<8xf32>
    %46 = vector.multi_reduction <maximumf>, %45, %cst_18 [1] : vector<8x192xf32> to vector<8xf32>
    %47 = vector.shape_cast %46 : vector<8xf32> to vector<8x1xf32>
    %48 = vector.broadcast %47 : vector<8x1xf32> to vector<8x192xf32>
    %49 = arith.cmpf oeq, %45, %48 : vector<8x192xf32>
    %c1073741824_i32_19 = arith.constant 1073741824 : i32
    %50 = vector.broadcast %c1073741824_i32_19 : i32 to vector<8x192xi32>
    %51 = arith.select %49, %20, %50 : vector<8x192xi1>, vector<8x192xi32>
    %cst_20 = arith.constant dense<2147483647> : vector<8xi32>
    %52 = vector.multi_reduction <minsi>, %51, %cst_20 [1] : vector<8x192xi32> to vector<8xi32>
    %53 = vector.shape_cast %52 : vector<8xi32> to vector<8x1xi32>
    %c1_i32 = arith.constant 1 : i32
    %54 = vector.broadcast %c1_i32 : i32 to vector<8x128xi32>
    %55 = arith.cmpi eq, %21, %54 : vector<8x128xi32>
    %56 = vector.shape_cast %47 : vector<8x1xf32> to vector<8x1xf32>
    %57 = vector.broadcast %56 : vector<8x1xf32> to vector<8x128xf32>
    %58 = arith.select %55, %57, %36 : vector<8x128xi1>, vector<8x128xf32>
    %c1_i32_21 = arith.constant 1 : i32
    %59 = vector.broadcast %c1_i32_21 : i32 to vector<8x128xi32>
    %60 = arith.cmpi eq, %21, %59 : vector<8x128xi32>
    %61 = vector.shape_cast %53 : vector<8x1xi32> to vector<8x1xi32>
    %62 = vector.broadcast %61 : vector<8x1xi32> to vector<8x128xi32>
    %63 = arith.select %60, %62, %41 : vector<8x128xi1>, vector<8x128xi32>
    %64 = vector.broadcast %53 : vector<8x1xi32> to vector<8x192xi32>
    %65 = arith.cmpi eq, %20, %64 : vector<8x192xi32>
    %cst_22 = arith.constant 0xFF800000 : f32
    %66 = vector.broadcast %cst_22 : f32 to vector<8x192xf32>
    %67 = arith.select %65, %66, %45 : vector<8x192xi1>, vector<8x192xf32>
    %cst_23 = arith.constant dense<0xFF800000> : vector<8xf32>
    %68 = vector.multi_reduction <maximumf>, %67, %cst_23 [1] : vector<8x192xf32> to vector<8xf32>
    %69 = vector.shape_cast %68 : vector<8xf32> to vector<8x1xf32>
    %70 = vector.broadcast %69 : vector<8x1xf32> to vector<8x192xf32>
    %71 = arith.cmpf oeq, %67, %70 : vector<8x192xf32>
    %c1073741824_i32_24 = arith.constant 1073741824 : i32
    %72 = vector.broadcast %c1073741824_i32_24 : i32 to vector<8x192xi32>
    %73 = arith.select %71, %20, %72 : vector<8x192xi1>, vector<8x192xi32>
    %cst_25 = arith.constant dense<2147483647> : vector<8xi32>
    %74 = vector.multi_reduction <minsi>, %73, %cst_25 [1] : vector<8x192xi32> to vector<8xi32>
    %75 = vector.shape_cast %74 : vector<8xi32> to vector<8x1xi32>
    %c2_i32 = arith.constant 2 : i32
    %76 = vector.broadcast %c2_i32 : i32 to vector<8x128xi32>
    %77 = arith.cmpi eq, %21, %76 : vector<8x128xi32>
    %78 = vector.shape_cast %69 : vector<8x1xf32> to vector<8x1xf32>
    %79 = vector.broadcast %78 : vector<8x1xf32> to vector<8x128xf32>
    %80 = arith.select %77, %79, %58 : vector<8x128xi1>, vector<8x128xf32>
    %c2_i32_26 = arith.constant 2 : i32
    %81 = vector.broadcast %c2_i32_26 : i32 to vector<8x128xi32>
    %82 = arith.cmpi eq, %21, %81 : vector<8x128xi32>
    %83 = vector.shape_cast %75 : vector<8x1xi32> to vector<8x1xi32>
    %84 = vector.broadcast %83 : vector<8x1xi32> to vector<8x128xi32>
    %85 = arith.select %82, %84, %63 : vector<8x128xi1>, vector<8x128xi32>
    %86 = vector.broadcast %75 : vector<8x1xi32> to vector<8x192xi32>
    %87 = arith.cmpi eq, %20, %86 : vector<8x192xi32>
    %cst_27 = arith.constant 0xFF800000 : f32
    %88 = vector.broadcast %cst_27 : f32 to vector<8x192xf32>
    %89 = arith.select %87, %88, %67 : vector<8x192xi1>, vector<8x192xf32>
    %cst_28 = arith.constant dense<0xFF800000> : vector<8xf32>
    %90 = vector.multi_reduction <maximumf>, %89, %cst_28 [1] : vector<8x192xf32> to vector<8xf32>
    %91 = vector.shape_cast %90 : vector<8xf32> to vector<8x1xf32>
    %92 = vector.broadcast %91 : vector<8x1xf32> to vector<8x192xf32>
    %93 = arith.cmpf oeq, %89, %92 : vector<8x192xf32>
    %c1073741824_i32_29 = arith.constant 1073741824 : i32
    %94 = vector.broadcast %c1073741824_i32_29 : i32 to vector<8x192xi32>
    %95 = arith.select %93, %20, %94 : vector<8x192xi1>, vector<8x192xi32>
    %cst_30 = arith.constant dense<2147483647> : vector<8xi32>
    %96 = vector.multi_reduction <minsi>, %95, %cst_30 [1] : vector<8x192xi32> to vector<8xi32>
    %97 = vector.shape_cast %96 : vector<8xi32> to vector<8x1xi32>
    %c3_i32 = arith.constant 3 : i32
    %98 = vector.broadcast %c3_i32 : i32 to vector<8x128xi32>
    %99 = arith.cmpi eq, %21, %98 : vector<8x128xi32>
    %100 = vector.shape_cast %91 : vector<8x1xf32> to vector<8x1xf32>
    %101 = vector.broadcast %100 : vector<8x1xf32> to vector<8x128xf32>
    %102 = arith.select %99, %101, %80 : vector<8x128xi1>, vector<8x128xf32>
    %c3_i32_31 = arith.constant 3 : i32
    %103 = vector.broadcast %c3_i32_31 : i32 to vector<8x128xi32>
    %104 = arith.cmpi eq, %21, %103 : vector<8x128xi32>
    %105 = vector.shape_cast %97 : vector<8x1xi32> to vector<8x1xi32>
    %106 = vector.broadcast %105 : vector<8x1xi32> to vector<8x128xi32>
    %107 = arith.select %104, %106, %85 : vector<8x128xi1>, vector<8x128xi32>
    %c0_32 = arith.constant 0 : index
    %c0_33 = arith.constant 0 : index
    %108 = vector.load %arg8[%c0_32, %c0_33] : memref<8x128xf32, #tpu.memory_space<vmem>>, vector<8x128xf32>
    tpu.vector_store %arg8[%c0_32, %c0_33], %102 {strides = array<i32>} : memref<8x128xf32, #tpu.memory_space<vmem>>, vector<8x128xf32>,
    %c0_34 = arith.constant 0 : index
    %c0_35 = arith.constant 0 : index
    %109 = vector.load %arg9[%c0_34, %c0_35] : memref<8x128xi32, #tpu.memory_space<vmem>>, vector<8x128xi32>
    tpu.vector_store %arg9[%c0_34, %c0_35], %107 {strides = array<i32>} : memref<8x128xi32, #tpu.memory_space<vmem>>, vector<8x128xi32>,
    %c0_i32_36 = arith.constant 0 : i32
    %110 = arith.cmpi eq, %arg1, %c0_i32_36 : i32
    %111 = arith.extui %110 : i1 to i32
    %c0_i32_37 = arith.constant 0 : i32
    %112 = arith.cmpi ne, %111, %c0_i32_37 : i32
    scf.if %112 {
      %c0_i32_38 = arith.constant 0 : i32
      %113 = vector.broadcast %c0_i32_38 : i32 to vector<8x128xi32>
      %114 = arith.maxsi %107, %113 : vector<8x128xi32>
      %c0_39 = arith.constant 0 : index
      %c0_40 = arith.constant 0 : index
      %115 = vector.load %arg6[%c0_39, %c0_40] : memref<8x128xi32, #tpu.memory_space<vmem>>, vector<8x128xi32>
      tpu.vector_store %arg6[%c0_39, %c0_40], %114 {strides = array<i32>} : memref<8x128xi32, #tpu.memory_space<vmem>>, vector<8x128xi32>,
      %cst_41 = arith.constant 0.000000e+00 : f32
      %116 = vector.broadcast %cst_41 : f32 to vector<8x128xf32>
      %117 = arith.maximumf %102, %116 : vector<8x128xf32>
      %c0_42 = arith.constant 0 : index
      %c0_43 = arith.constant 0 : index
      %118 = vector.load %arg7[%c0_42, %c0_43] : memref<8x128xf32, #tpu.memory_space<vmem>>, vector<8x128xf32>
      tpu.vector_store %arg7[%c0_42, %c0_43], %117 {strides = array<i32>} : memref<8x128xf32, #tpu.memory_space<vmem>>, vector<8x128xf32>,
    } else {
    }
    return
  }
  func.func @transform_0(%arg0: i32, %arg1: i32) -> (i32, i32) {
    %c0_i32 = arith.constant 0 : i32
    %c0_i32_0 = arith.constant 0 : i32
    return %arg0, %c0_i32 : i32, i32
  }
  func.func @transform_1(%arg0: i32, %arg1: i32) -> (i32, i32) {
    %c0_i32 = arith.constant 0 : i32
    %c0_i32_0 = arith.constant 0 : i32
    %c0_i32_1 = arith.constant 0 : i32
    return %c0_i32, %c0_i32_0 : i32, i32
  }
  func.func @transform_2(%arg0: i32, %arg1: i32) -> (i32, i32) {
    %c0_i32 = arith.constant 0 : i32
    %c0_i32_0 = arith.constant 0 : i32
    return %c0_i32, %arg1 : i32, i32
  }
  func.func @transform_3(%arg0: i32, %arg1: i32) -> (i32, i32) {
    %c0_i32 = arith.constant 0 : i32
    %c0_i32_0 = arith.constant 0 : i32
    return %c0_i32, %arg1 : i32, i32
  }
  func.func @transform_4(%arg0: i32, %arg1: i32) -> (i32, i32) {
    %c0_i32 = arith.constant 0 : i32
    %c0_i32_0 = arith.constant 0 : i32
    return %arg0, %c0_i32 : i32, i32
  }
  func.func @transform_5(%arg0: i32, %arg1: i32) -> (i32, i32) {
    %c0_i32 = arith.constant 0 : i32
    %c0_i32_0 = arith.constant 0 : i32
    return %arg0, %c0_i32 : i32, i32
  }
}

</mosaic_0001>

<llo_original>
// kernel: tpu_custom_call.1
$region0: #{tpu_custom_call.1}
  #allocation0 [shape = 'u32[]', space=smem, size = 0x4, offset = 0x4, fixed_abs, tag = 'smem constant byte address 0x4 - core index']
  #allocation1 [shape = 'u32[144,128]{1,0:T(1,128)}', space=vmem, size = 0x12000, scoped, tag = 'internal scratch']
  #allocation2 [shape = 'f32[8,128]{1,0:T(8,128)}', space=vmem, size = 0x1000, scoped, tag = 'scratch operand']
  #allocation3 [shape = 's32[8,128]{1,0:T(8,128)}', space=vmem, size = 0x1000, scoped, tag = 'scratch operand']
  %s0 = inlined_call_operand.hbm [shape: f32[8,32], index: 0, kind: input, shape index: {}]
  %s1 = inlined_call_operand.vmem [shape: f32[1,32], index: 1, kind: input, shape index: {}]
  %s2 = inlined_call_operand.hbm [shape: bf16[32,64], index: 2, kind: input, shape index: {}]
  %s3 = inlined_call_operand.vmem [shape: f32[1,64], index: 3, kind: input, shape index: {}]
  %s4 = inlined_call_operand.hbm [shape: s32[8,128], index: 4, kind: output, shape index: {0}]
  %s5 = inlined_call_operand.hbm [shape: f32[8,128], index: 5, kind: output, shape index: {1}]
  %6 = xla_tuple %s4, %s5
  %s7 = sld [smem:[#allocation0]]
  $region50: #{tpu_custom_call.1} parent=0
    _
  %s9 = ssub.s32 1, %s7
  %s10 = scalar_select 0, %s9, %s7
  $region1: #{tpu_custom_call.1} parent=0
    #allocation4 [shape = 'u8[4096]{0}', space=vmem, size = 0x1000, scoped, tag = 'input window, operand 0, single buffered']
    #allocation5 [shape = 's32[1]{0}', space=sflag, size = 0x4, scoped, tag = 'scoped memory for tpu_custom_call.1']
    #allocation6 [shape = 's32[1]{0}', space=sflag, size = 0x4, scoped, tag = 'scoped memory for tpu_custom_call.1']
    #allocation7 [shape = 'u8[8192]{0}', space=vmem, size = 0x2000, scoped, tag = 'input window, operand 2, single buffered']
    #allocation8 [shape = 's32[1]{0}', space=sflag, size = 0x4, scoped, tag = 'scoped memory for tpu_custom_call.1']
    #allocation9 [shape = 'u8[4096]{0}', space=vmem, size = 0x1000, scoped, tag = 'output window, operand 0, single buffered']
    #allocation10 [shape = 'u8[4096]{0}', space=vmem, size = 0x1000, scoped, tag = 'output window, operand 1, single buffered']
    #allocation11 [shape = 's32[1]{0}', space=sflag, size = 0x4, scoped, tag = 'scoped memory for tpu_custom_call.1']
    %11 = vsyncpa [#allocation5], 0
    %12 = vsyncpa [#allocation8], 0
    %13 = vsyncpa [#allocation6], 0
    %14 = vsyncpa [#allocation11], 0
    // Predicated region
    $region2: #{tpu_custom_call.1} parent=1 // pred_check
      _
    $region3: #{tpu_custom_call.1} parent=1 // pred_check_branch
      %16 = sbr.rel (0) target = $region5
    $region4: #{tpu_custom_call.1} parent=1 // pred_region
      %s18 = ssub.s32 128, 128
      %19 = vsyncadd [#allocation5], %s18
      %s21 = sshll.u32 [#allocation4], 4
      %s22 = int_to_ptr.vmem [resolvable:$true] %s21
      %24 = dma.hbm_to_vmem [thread:$0]  %s0, 128, %s22, [#allocation5]
    $region5: #{tpu_custom_call.1} parent=1 // pred_fallthru
      _
    // Predicated region
    $region6: #{tpu_custom_call.1} parent=1 // pred_check
      _
    $region7: #{tpu_custom_call.1} parent=1 // pred_check_branch
      %26 = sbr.rel (0) target = $region9
    $region8: #{tpu_custom_call.1} parent=1 // pred_region
      _
    $region9: #{tpu_custom_call.1} parent=1 // pred_fallthru
      _
    // Predicated region
    $region10: #{tpu_custom_call.1} parent=1 // pred_check
      _
    $region11: #{tpu_custom_call.1} parent=1 // pred_check_branch
      %28 = sbr.rel (0) target = $region13
    $region12: #{tpu_custom_call.1} parent=1 // pred_region
      %s30 = ssub.s32 256, 256
      %31 = vsyncadd [#allocation8], %s30
      %s32 = sshll.u32 [#allocation7], 4
      %s33 = int_to_ptr.vmem [resolvable:$true] %s32
      %38 = dma.hbm_to_vmem [thread:$0]  %s2, 256, %s33, [#allocation8], 64, 64, 4
    $region13: #{tpu_custom_call.1} parent=1 // pred_fallthru
      _
    // Predicated region
    $region14: #{tpu_custom_call.1} parent=1 // pred_check
      _
    $region15: #{tpu_custom_call.1} parent=1 // pred_check_branch
      %40 = sbr.rel (0) target = $region17
    $region16: #{tpu_custom_call.1} parent=1 // pred_region
      _
    $region17: #{tpu_custom_call.1} parent=1 // pred_fallthru
      _
    // Predicated region
    $region18: #{tpu_custom_call.1} parent=1 // pred_check
      _
    $region19: #{tpu_custom_call.1} parent=1 // pred_check_branch
      %42 = sbr.rel (0) target = $region21
    $region20: #{tpu_custom_call.1} parent=1 // pred_region
      %43 = dma.done [#allocation5], 128
    $region21: #{tpu_custom_call.1} parent=1 // pred_fallthru
      _
    // Predicated region
    $region22: #{tpu_custom_call.1} parent=1 // pred_check
      _
    $region23: #{tpu_custom_call.1} parent=1 // pred_check_branch
      %45 = sbr.rel (0) target = $region25
    $region24: #{tpu_custom_call.1} parent=1 // pred_region
      %46 = dma.done [#allocation8], 256
    $region25: #{tpu_custom_call.1} parent=1 // pred_fallthru
      _
    %p48 = scmp.eq.s32.totalorder 0, 0
    // Predicated region
    $region26: #{tpu_custom_call.1} parent=1 // pred_check
      %p49 = pneg %p48
    $region27: #{tpu_custom_call.1} parent=1 // pred_check_branch
      %51 = sbr.rel (%p49) target = $region29
    $region28: #{tpu_custom_call.1} parent=1 // pred_region
      %52 = vst [vmem:[#allocation2] sm:$0xff] -inf
      %53 = vst [vmem:[#allocation3] sm:$0xff] 4294967295
    $region29: #{tpu_custom_call.1} parent=1 // pred_fallthru
      _
    %v54 = vld [vmem:[#allocation4] sm:$0xff]
    %v55 = vld [vmem:[%s1] sm:$0x1]
    %v57 = vlaneseq
    %v58 = vshrl.u32 %v57, 7
    %v59 = vsub.s32 0, %v58
    %v60 = vrot.slane %v55, %v59
    %v62 = vsub.f32 %v54, %v60
    %v63 = vpack.c.bf16 %v62, %v62
    %v64 = vld [vmem:[#allocation7] sm:$0xf]
    %v65 = vld [vmem:[#allocation7 + $0x4] sm:$0xf]
    %v66 = vld [vmem:[#allocation7 + $0x8] sm:$0xf]
    %v67 = vld [vmem:[#allocation7 + $0xc] sm:$0xf]
    %v68 = vld [vmem:[%s3] sm:$0x1]
    %v70 = vlaneseq
    %v71 = vshrl.u32 %v70, 7
    %v72 = vsub.s32 0, %v71
    %v73 = vrot.slane %v68, %v72
    %v79 = vunpack.c.l.b16 %v64
    %v80 = vunpack.c.l.b16 %v65
    %v81 = vunpack.c.l.b16 %v66
    %v82 = vunpack.c.l.b16 %v67
    %v83 = vpack.c.b16 %v80, %v79
    %v84 = vpack.c.b16 %v82, %v81
    %vm87 = vcmask 261120
    %v89 = vsel %vm87, %v63, 0
    %91 = vmatprep.subr.bf16.mxu0 0
    %92 = vmatpush1.bf16.msra.mxu0 0
    %93 = vmatprep.subr.bf16.mxu0 0
    %94 = vmatpush1.bf16.msra.mxu0 0
    %95 = vmatprep.subr.bf16.mxu0 0
    %96 = vmatpush1.bf16.msra.mxu0 0
    %97 = vmatprep.subr.bf16.mxu0 0
    %98 = vmatpush1.bf16.msra.mxu0 0
    %99 = vmatprep.subr.bf16.mxu0 0
    %100 = vmatpush1.bf16.msra.mxu0 0
    %101 = vmatprep.subr.bf16.mxu0 0
    %102 = vmatpush1.bf16.msra.mxu0 0
    %103 = vmatprep.subr.bf16.mxu0 0
    %104 = vmatpush1.bf16.msra.mxu0 %v84
    %105 = vmatprep.subr.bf16.mxu0 0
    %106 = vmatpush1.bf16.msra.mxu0 %v83
    %107 = vmatprep.subr.bf16.mxu0 0
    %108 = vmatpush2.bf16.msra.mxu0 0
    %109 = vmatprep.subr.bf16.mxu0 0
    %110 = vmatpush2.bf16.msra.mxu0 0
    %111 = vmatprep.subr.bf16.mxu0 0
    %112 = vmatpush2.bf16.msra.mxu0 0
    %113 = vmatprep.subr.bf16.mxu0 0
    %114 = vmatpush2.bf16.msra.mxu0 0
    %115 = vmatprep.subr.bf16.mxu0 0
    %116 = vmatpush2.bf16.msra.mxu0 0
    %117 = vmatprep.subr.bf16.mxu0 0
    %118 = vmatpush2.bf16.msra.mxu0 0
    %119 = vmatprep.subr.bf16.mxu0 0
    %120 = vmatpush2.bf16.msra.mxu0 0
    %121 = vmatprep.subr.bf16.mxu0 0
    %122 = vmatpush2.bf16.msra.mxu0 0
    %123 = vmatprep.mubr.bf16.mxu0 0
    %124 = vmatmul.mubr.bf16.gmra.mxu0 %v89
    %v125 = vpop.f32.mrf.mxu0
    %v126 = vadd.f32 %v73, %v125
    %v127 = vpop.f32.mrf.mxu0
    %v128 = vpop.f32.mrf.mxu0
    %v129 = vpop.f32.mrf.mxu0
    %130 = vdwg.mxu0
    %s131 = smul.u32 0, 64
    %v132 = vlaneseq
    %v133 = vand.u32 %v132, 127
    %v134 = vstv %s131
    %v135 = vadd.s32 %v133, %v134
    %v136 = vld [vmem:[#allocation2] sm:$0xff]
    %v137 = vld [vmem:[#allocation3] sm:$0xff]
    %vm138 = vcmask 523264
    %v139 = vsel %vm138, %v126, -inf
    %v140 = vmax.f32 %v136, %v139
    %141 = vmax.xlane.f32.xlu0 %v140
    %v142 = vpop.xlane.xlu0 %141
    %vm143 = vcmp.eq.f32.partialorder %v136, %v142
    %vm144 = vcmp.eq.f32.partialorder %v126, %v142
    %v145 = vsel %vm143, %v137, 1073741824
    %v146 = vsel %vm144, %v135, 1073741824
    %v147 = vsel %vm138, %v146, 2147483647
    %vm148 = vcmp.lt.s32.totalorder %v145, %v147
    %v149 = vsel %vm148, %v145, %v147
    %v150 = vand.u32 %v149, 65535
    %v151 = vshra.s32 %v149, 16
    %v152 = vcvt.s32.f32 %v150
    %v153 = vcvt.s32.f32 %v151
    %154 = vmin.xlane.f32.xlu0 %v153
    %v155 = vpop.xlane.xlu0 %154
    %vm156 = vcmp.eq.f32.partialorder %v153, %v155
    %v157 = vsel %vm156, %v152, inf
    %158 = vmin.xlane.f32.xlu0 %v157
    %v159 = vpop.xlane.xlu0 %158
    %v160 = vcvt.f32.s32 %v159
    %v161 = vcvt.f32.s32 %v155
    %v162 = vshll.u32 %v161, 16
    %v163 = vadd.s32 %v162, %v160
    %vm164 = vcmp.eq.s32.totalorder %v133, 0
    %v165 = vsel %vm164, %v142, -inf
    %v166 = vsel %vm164, %v163, 4294967295
    %vm167 = vcmp.eq.s32.totalorder %v137, %v163
    %vm168 = vcmp.eq.s32.totalorder %v135, %v163
    %v169 = vsel %vm167, -inf, %v136
    %v170 = vsel %vm168, -inf, %v126
    %v171 = vsel %vm138, %v170, -inf
    %v172 = vmax.f32 %v169, %v171
    %173 = vmax.xlane.f32.xlu0 %v172
    %v174 = vpop.xlane.xlu0 %173
    %vm175 = vcmp.eq.f32.partialorder %v169, %v174
    %vm176 = vcmp.eq.f32.partialorder %v170, %v174
    %v177 = vsel %vm175, %v137, 1073741824
    %v178 = vsel %vm176, %v135, 1073741824
    %v179 = vsel %vm138, %v178, 2147483647
    %vm180 = vcmp.lt.s32.totalorder %v177, %v179
    %v181 = vsel %vm180, %v177, %v179
    %v182 = vand.u32 %v181, 65535
    %v183 = vshra.s32 %v181, 16
    %v184 = vcvt.s32.f32 %v182
    %v185 = vcvt.s32.f32 %v183
    %186 = vmin.xlane.f32.xlu0 %v185
    %v187 = vpop.xlane.xlu0 %186
    %vm188 = vcmp.eq.f32.partialorder %v185, %v187
    %v189 = vsel %vm188, %v184, inf
    %190 = vmin.xlane.f32.xlu0 %v189
    %v191 = vpop.xlane.xlu0 %190
    %v192 = vcvt.f32.s32 %v191
    %v193 = vcvt.f32.s32 %v187
    %v194 = vshll.u32 %v193, 16
    %v195 = vadd.s32 %v194, %v192
    %vm196 = vcmp.eq.s32.totalorder %v133, 1
    %v197 = vsel %vm196, %v174, %v165
    %v198 = vsel %vm196, %v195, %v166
    %vm199 = vcmp.eq.s32.totalorder %v137, %v195
    %vm200 = vcmp.eq.s32.totalorder %v135, %v195
    %v201 = vsel %vm199, -inf, %v169
    %v202 = vsel %vm200, -inf, %v170
    %v203 = vsel %vm138, %v202, -inf
    %v204 = vmax.f32 %v201, %v203
    %205 = vmax.xlane.f32.xlu0 %v204
    %v206 = vpop.xlane.xlu0 %205
    %vm207 = vcmp.eq.f32.partialorder %v201, %v206
    %vm208 = vcmp.eq.f32.partialorder %v202, %v206
    %v209 = vsel %vm207, %v137, 1073741824
    %v210 = vsel %vm208, %v135, 1073741824
    %v211 = vsel %vm138, %v210, 2147483647
    %vm212 = vcmp.lt.s32.totalorder %v209, %v211
    %v213 = vsel %vm212, %v209, %v211
    %v214 = vand.u32 %v213, 65535
    %v215 = vshra.s32 %v213, 16
    %v216 = vcvt.s32.f32 %v214
    %v217 = vcvt.s32.f32 %v215
    %218 = vmin.xlane.f32.xlu0 %v217
    %v219 = vpop.xlane.xlu0 %218
    %vm220 = vcmp.eq.f32.partialorder %v217, %v219
    %v221 = vsel %vm220, %v216, inf
    %222 = vmin.xlane.f32.xlu0 %v221
    %v223 = vpop.xlane.xlu0 %222
    %v224 = vcvt.f32.s32 %v223
    %v225 = vcvt.f32.s32 %v219
    %v226 = vshll.u32 %v225, 16
    %v227 = vadd.s32 %v226, %v224
    %vm228 = vcmp.eq.s32.totalorder %v133, 2
    %v229 = vsel %vm228, %v206, %v197
    %v230 = vsel %vm228, %v227, %v198
    %vm231 = vcmp.eq.s32.totalorder %v137, %v227
    %vm232 = vcmp.eq.s32.totalorder %v135, %v227
    %v233 = vsel %vm231, -inf, %v201
    %v234 = vsel %vm232, -inf, %v202
    %v235 = vsel %vm138, %v234, -inf
    %v236 = vmax.f32 %v233, %v235
    %237 = vmax.xlane.f32.xlu0 %v236
    %v238 = vpop.xlane.xlu0 %237
    %vm239 = vcmp.eq.f32.partialorder %v233, %v238
    %vm240 = vcmp.eq.f32.partialorder %v234, %v238
    %v241 = vsel %vm239, %v137, 1073741824
    %v242 = vsel %vm240, %v135, 1073741824
    %v243 = vsel %vm138, %v242, 2147483647
    %vm244 = vcmp.lt.s32.totalorder %v241, %v243
    %v245 = vsel %vm244, %v241, %v243
    %v246 = vand.u32 %v245, 65535
    %v247 = vshra.s32 %v245, 16
    %v248 = vcvt.s32.f32 %v246
    %v249 = vcvt.s32.f32 %v247
    %250 = vmin.xlane.f32.xlu0 %v249
    %v251 = vpop.xlane.xlu0 %250
    %vm252 = vcmp.eq.f32.partialorder %v249, %v251
    %v253 = vsel %vm252, %v248, inf
    %254 = vmin.xlane.f32.xlu0 %v253
    %v255 = vpop.xlane.xlu0 %254
    %v256 = vcvt.f32.s32 %v255
    %v257 = vcvt.f32.s32 %v251
    %v258 = vshll.u32 %v257, 16
    %v259 = vadd.s32 %v258, %v256
    %vm260 = vcmp.eq.s32.totalorder %v133, 3
    %v261 = vsel %vm260, %v238, %v229
    %v262 = vsel %vm260, %v259, %v230
    %263 = vst [vmem:[#allocation2] sm:$0xff] %v261
    %264 = vst [vmem:[#allocation3] sm:$0xff] %v262
    // Predicated region
    $region30: #{tpu_custom_call.1} parent=1 // pred_check
      %p265 = pneg %p48
    $region31: #{tpu_custom_call.1} parent=1 // pred_check_branch
      %267 = sbr.rel (%p265) target = $region33
    $region32: #{tpu_custom_call.1} parent=1 // pred_region
      %vm268 = vcmp.gt.s32.totalorder %v262, 0
      %v269 = vsel %vm268, %v262, 0
      %270 = vst [vmem:[#allocation9] sm:$0xff] %v269
      %v271 = vmax.f32 %v261, 0.0
      %272 = vst [vmem:[#allocation10] sm:$0xff] %v271
    $region33: #{tpu_custom_call.1} parent=1 // pred_fallthru
      _
    // Predicated region
    $region34: #{tpu_custom_call.1} parent=1 // pred_check
      _
    $region35: #{tpu_custom_call.1} parent=1 // pred_check_branch
      %274 = sbr.rel (0) target = $region37
    $region36: #{tpu_custom_call.1} parent=1 // pred_region
      %s276 = ssub.s32 128, 128
      %277 = vsyncadd [#allocation6], %s276
      %s279 = sshll.u32 [#allocation9], 4
      %s280 = int_to_ptr.vmem [resolvable:$true] %s279
      %282 = dma.vmem_to_hbm [thread:$0]  %s280, 128, %s4, [#allocation6]
    $region37: #{tpu_custom_call.1} parent=1 // pred_fallthru
      _
    // Predicated region
    $region38: #{tpu_custom_call.1} parent=1 // pred_check
      _
    $region39: #{tpu_custom_call.1} parent=1 // pred_check_branch
      %284 = sbr.rel (0) target = $region41
    $region40: #{tpu_custom_call.1} parent=1 // pred_region
      %s286 = ssub.s32 128, 128
      %287 = vsyncadd [#allocation11], %s286
      %s289 = sshll.u32 [#allocation10], 4
      %s290 = int_to_ptr.vmem [resolvable:$true] %s289
      %292 = dma.vmem_to_hbm [thread:$0]  %s290, 128, %s5, [#allocation11]
    $region41: #{tpu_custom_call.1} parent=1 // pred_fallthru
      _
    // Predicated region
    $region42: #{tpu_custom_call.1} parent=1 // pred_check
      _
    $region43: #{tpu_custom_call.1} parent=1 // pred_check_branch
      %294 = sbr.rel (0) target = $region45
    $region44: #{tpu_custom_call.1} parent=1 // pred_region
      %295 = dma.done [#allocation6], 128
    $region45: #{tpu_custom_call.1} parent=1 // pred_fallthru
      _
    // Predicated region
    $region46: #{tpu_custom_call.1} parent=1 // pred_check
      _
    $region47: #{tpu_custom_call.1} parent=1 // pred_check_branch
      %297 = sbr.rel (0) target = $region49
    $region48: #{tpu_custom_call.1} parent=1 // pred_region
      %298 = dma.done [#allocation11], 128
    $region49: #{tpu_custom_call.1} parent=1 // pred_fallthru
      _
    %299 = vsyncpa [#allocation5], 1
    %300 = vsyncpa [#allocation8], 1
    %301 = vsyncpa [#allocation6], 1
    %302 = vsyncpa [#allocation11], 1

</llo_original>
